<compile_context>
chip_gen: v6e
topology: v6e:2x2x1
jax: 0.10.0
libtpu: 0.0.40
codegen_flags: <defaults>
</compile_context>

<pallas_src>
import functools

import jax
import jax.numpy as jnp
from jax.experimental import pallas as pl
from jax.experimental.pallas import tpu as pltpu


EPS_GIN = 0.0          # GINConv default eps
BN_EPS = 1e-5          # BatchNorm1d default eps
LANE = 128
SUBLANE = 8


def _round_up(x, m):
    return (x + m - 1) // m * m


def _mlp(agg, wa_ref, ba_ref, s_ref, t_ref, wb_ref, bb_ref):
    """Linear -> BatchNorm1d (eval, fused scale/shift) -> ReLU -> Linear -> ReLU."""
    z = jnp.dot(agg, wa_ref[...], preferred_element_type=jnp.float32) + ba_ref[...]
    z = jnp.maximum(z * s_ref[...] + t_ref[...], 0.0)
    z = jnp.dot(z, wb_ref[...], preferred_element_type=jnp.float32) + bb_ref[...]
    return jnp.maximum(z, 0.0)


def _gin_layer_kernel(tile_k, n_tk,
                      kmap_ref, flags_ref, adj_ref, h_ref,
                      wa_ref, ba_ref, s_ref, t_ref, wb_ref, bb_ref,
                      out_ref, acc_ref):
    """One GINConv: out-tile = MLP( sum_k adjhat(i,k) @ h(k) ), self-term folded."""
    i = pl.program_id(0)
    k = pl.program_id(1)

    @pl.when(k == 0)
    def _():
        acc_ref[...] = jnp.zeros_like(acc_ref)

    # Block-sparse skip: zero adjacency tiles were remapped (no fresh DMA) and
    # their matmul is skipped.  When the flag is set the remapped block index
    # equals k, so the plain k offset into resident bf16 h is the right operand.
    @pl.when(flags_ref[i * n_tk + k] != 0)
    def _():
        koff = pl.multiple_of(k * tile_k, tile_k)
        acc_ref[...] += jnp.dot(adj_ref[...], h_ref[pl.ds(koff, tile_k), :],
                                preferred_element_type=jnp.float32)

    @pl.when(k == pl.num_programs(1) - 1)
    def _():
        out_ref[...] = _mlp(acc_ref[...], wa_ref, ba_ref, s_ref, t_ref,
                            wb_ref, bb_ref).astype(out_ref.dtype)


def _gin_layer_pool_kernel(tile_m, tile_k, n_tk,
                           kmap_ref, flags_ref, adj_ref, h_ref,
                           wa_ref, ba_ref, s_ref, t_ref, wb_ref, bb_ref,
                           lo_ref, hi_ref, out_ref, acc_ref):
    """Last GINConv fused with segment_csr sum-pooling -> per-row-tile partials."""
    i = pl.program_id(0)
    k = pl.program_id(1)

    @pl.when(k == 0)
    def _():
        acc_ref[...] = jnp.zeros_like(acc_ref)

    @pl.when(flags_ref[i * n_tk + k] != 0)
    def _():
        koff = pl.multiple_of(k * tile_k, tile_k)
        acc_ref[...] += jnp.dot(adj_ref[...], h_ref[pl.ds(koff, tile_k), :],
                                preferred_element_type=jnp.float32)

    @pl.when(k == pl.num_programs(1) - 1)
    def _():
        h_out = _mlp(acc_ref[...], wa_ref, ba_ref, s_ref, t_ref, wb_ref, bb_ref)
        # segment_csr(h, batch, 'sum'): rebuild the per-tile indicator from the
        # CSR pointer bounds (padded graph rows have lo == hi == 0 -> empty,
        # padded node ids >= N are always excluded).
        node_ids = i * tile_m + jax.lax.broadcasted_iota(jnp.int32, (1, tile_m), 1)
        seg = jnp.logical_and(node_ids >= lo_ref[...],
                              node_ids < hi_ref[...]).astype(jnp.float32)
        out_ref[0] = jnp.dot(seg, h_out, preferred_element_type=jnp.float32)


def _pick_tiles(n):
    """tile_m small enough for >=2 row tiles when N allows; tile_k as large as
    possible (<=2048) while still dividing the padded node count."""
    n_lane = _round_up(max(n, 1), LANE)
    tile_m = 256 if n_lane % 256 == 0 else LANE
    n_p = n_lane                      # no extra node padding beyond lane alignment
    n_tm = n_p // tile_m
    max_f = max(1, min(n_tm, 2048 // tile_m))
    fac = 1
    for cand in range(max_f, 0, -1):
        if n_tm % cand == 0:
            fac = cand
            break
    tile_k = tile_m * fac
    return tile_m, tile_k, n_p


def _vmem_limit_bytes():
    """~3/4 of the per-core VMEM capacity (48 MiB on v7x, 96 MiB on v5e/v6e)."""
    cap = None
    try:
        cap = getattr(pltpu.get_tpu_info(), "vmem_capacity_bytes", None)
    except Exception:
        cap = None
    if not cap:
        return 48 * 1024 * 1024
    return int(min(max(cap * 3 // 4, 32 * 1024 * 1024), 100 * 1024 * 1024))


def gin_forward(x, adj, batch_ptr, params, num_graphs):
    """x: [N, ins] f32, adj: [N, N] 0/1, batch_ptr: [G+1] int32 (CSR indptr)."""
    n, ins = x.shape
    hidden = params["w1b"].shape[0]
    outs = params["w3b"].shape[1]

    # Lane-dense padding of every feature dim.  (If real configs use
    # hidden/ins >= 256, pad to 256 for full v6e/v7x MXU column utilization.)
    ins_p = _round_up(ins, LANE)
    hid_p = _round_up(hidden, LANE)
    out_p = _round_up(outs, LANE)
    tile_m, tile_k, n_p = _pick_tiles(n)
    n_ti = n_p // tile_m
    n_tk = n_p // tile_k
    g_p = _round_up(num_graphs, SUBLANE)
    grid = (n_ti, n_tk)

    def pad2(a, rows, cols):
        return jnp.pad(a, ((0, rows - a.shape[0]), (0, cols - a.shape[1])))

    # Fold the (1+eps) self-term into the adjacency diagonal; padded diagonal
    # entries stay zero so padded node rows remain masked.
    adj_f = adj.astype(jnp.float32) + (1.0 + EPS_GIN) * jnp.eye(n, dtype=jnp.float32)
    adj_bf = pad2(adj_f, n_p, n_p).astype(jnp.bfloat16)   # values 0/1/(1+eps): exact

    # Node features as bf16 once (halves resident VMEM, removes in-kernel cast).
    x_bf = pad2(x.astype(jnp.float32), n_p, ins_p).astype(jnp.bfloat16)

    # Per-(i,k)-tile nonzero flags + "last nonzero tile" remap (block-sparse skip).
    adj_tiles = adj_bf.reshape(n_ti, tile_m, n_tk, tile_k)
    flags = jnp.any(adj_tiles != 0, axis=(1, 3))                       # [n_ti, n_tk]
    ar = jnp.arange(n_tk, dtype=jnp.int32)[None, :]
    kmap = jax.lax.cummax(jnp.where(flags, ar, 0), axis=1).astype(jnp.int32)
    flags_i = flags.astype(jnp.int32).reshape(-1)
    kmap_i = kmap.reshape(-1)

    # CSR pointer bounds for in-kernel segment pooling.
    lo = jnp.zeros((g_p, 1), jnp.int32).at[:num_graphs, 0].set(batch_ptr[:-1])
    hi = jnp.zeros((g_p, 1), jnp.int32).at[:num_graphs, 0].set(batch_ptr[1:])

    def pad_layer(wa, ba, s, t, wb, bb, fi, fo):
        return (pad2(wa, fi, hid_p), pad2(ba, 1, hid_p), pad2(s, 1, hid_p),
                pad2(t, 1, hid_p), pad2(wb, hid_p, fo), pad2(bb, 1, fo))

    l1 = pad_layer(params["w1a"], params["b1a"], params["s1"], params["t1"],
                   params["w1b"], params["b1b"], ins_p, hid_p)
    l2 = pad_layer(params["w2a"], params["b2a"], params["s2"], params["t2"],
                   params["w2b"], params["b2b"], hid_p, hid_p)
    l3 = pad_layer(params["w3a"], params["b3a"], params["s3"], params["t3"],
                   params["w3b"], params["b3b"], hid_p, out_p)

    def layer_specs(f_in, f_out):
        const = lambda i, k, km, fl: (0, 0)
        return [
            # adj: streamed tiles, zero tiles remapped to last nonzero (no re-DMA)
            pl.BlockSpec((tile_m, tile_k),
                         lambda i, k, km, fl: (i, km[i * n_tk + k])),
            pl.BlockSpec((n_p, f_in), const),        # h: VMEM-resident, bf16
            pl.BlockSpec((f_in, hid_p), const),      # W_a
            pl.BlockSpec((1, hid_p), const),         # b_a
            pl.BlockSpec((1, hid_p), const),         # BN scale
            pl.BlockSpec((1, hid_p), const),         # BN shift
            pl.BlockSpec((hid_p, f_out), const),     # W_b
            pl.BlockSpec((1, f_out), const),         # b_b
        ]

    def cost(f_in, f_out):
        flops = (2 * n_p * n_p * f_in + 2 * n_p * f_in * hid_p
                 + 2 * n_p * hid_p * f_out)
        bytes_accessed = (n_p * n_p * 2 + n_p * f_in * 2 + n_p * f_out * 2
                          + f_in * hid_p * 4 + hid_p * f_out * 4)
        return pl.CostEstimate(flops=flops, transcendentals=0,
                               bytes_accessed=bytes_accessed)

    cparams = pltpu.CompilerParams(
        dimension_semantics=("parallel", "arbitrary"),
        vmem_limit_bytes=_vmem_limit_bytes())

    def run_layer(h, wts, f_in, f_out):
        return pl.pallas_call(
            functools.partial(_gin_layer_kernel, tile_k, n_tk),
            out_shape=jax.ShapeDtypeStruct((n_p, f_out), jnp.bfloat16),
            grid_spec=pltpu.PrefetchScalarGridSpec(
                num_scalar_prefetch=2, grid=grid,
                in_specs=layer_specs(f_in, f_out),
                out_specs=pl.BlockSpec((tile_m, f_out),
                                       lambda i, k, km, fl: (i, 0)),
                scratch_shapes=[pltpu.VMEM((tile_m, f_in), jnp.float32)]),
            compiler_params=cparams,
            cost_estimate=cost(f_in, f_out),
        )(kmap_i, flags_i, adj_bf, h, *wts)

    def run_final_layer(h, wts, f_in, f_out):
        # Per-row-tile pooled partials keep the i axis "parallel" (v7x 2 TCs);
        # the tiny [n_ti, G, OUT] reduction is done in the wrapper.
        partials = pl.pallas_call(
            functools.partial(_gin_layer_pool_kernel, tile_m, tile_k, n_tk),
            out_shape=jax.ShapeDtypeStruct((n_ti, g_p, f_out), jnp.float32),
            grid_spec=pltpu.PrefetchScalarGridSpec(
                num_scalar_prefetch=2, grid=grid,
                in_specs=layer_specs(f_in, f_out) + [
                    pl.BlockSpec((g_p, 1), lambda i, k, km, fl: (0, 0)),  # seg lo
                    pl.BlockSpec((g_p, 1), lambda i, k, km, fl: (0, 0)),  # seg hi
                ],
                out_specs=pl.BlockSpec((1, g_p, f_out),
                                       lambda i, k, km, fl: (i, 0, 0)),
                scratch_shapes=[pltpu.VMEM((tile_m, f_in), jnp.float32)]),
            compiler_params=cparams,
            cost_estimate=cost(f_in, f_out),
        )(kmap_i, flags_i, adj_bf, h, *wts, lo, hi)
        return jnp.sum(partials, axis=0)

    h1 = run_layer(x_bf, l1, ins_p, hid_p)
    h2 = run_layer(h1, l2, hid_p, hid_p)
    pooled = run_final_layer(h2, l3, hid_p, out_p)
    return pooled[:num_graphs, :outs]


def _linear_init(key, fan_in, fan_out):
    # Mimic torch.nn.Linear default init: U(-1/sqrt(fan_in), 1/sqrt(fan_in)).
    kw, kb = jax.random.split(key)
    bound = 1.0 / jnp.sqrt(fan_in)
    w = jax.random.uniform(kw, (fan_in, fan_out), jnp.float32, -bound, bound)
    b = jax.random.uniform(kb, (1, fan_out), jnp.float32, -bound, bound)
    return w, b


def make_params(key, ins, hidden, outs):
    keys = jax.random.split(key, 6)

    def bn_init(width):
        # gamma=1, beta=0, running_mean=0, running_var=1  (PyTorch init)
        scale = jnp.ones((1, width), jnp.float32) / jnp.sqrt(1.0 + BN_EPS)
        shift = jnp.zeros((1, width), jnp.float32)
        return scale, shift

    p = {}
    p["w1a"], p["b1a"] = _linear_init(keys[0], ins, hidden)
    p["s1"], p["t1"] = bn_init(hidden)
    p["w1b"], p["b1b"] = _linear_init(keys[1], hidden, hidden)

    p["w2a"], p["b2a"] = _linear_init(keys[2], hidden, hidden)
    p["s2"], p["t2"] = bn_init(hidden)
    p["w2b"], p["b2b"] = _linear_init(keys[3], hidden, hidden)

    p["w3a"], p["b3a"] = _linear_init(keys[4], hidden, hidden)
    p["s3"], p["t3"] = bn_init(hidden)
    p["w3b"], p["b3b"] = _linear_init(keys[5], hidden, outs)
    return p


def _reference(x, adj, batch_ptr, params, num_graphs):
    """Pure-JAX f32 reference of the same eval-mode forward pass."""
    def conv(h, wa, ba, s, t, wb, bb):
        agg = adj @ h + (1.0 + EPS_GIN) * h
        z = agg @ wa + ba
        z = jnp.maximum(z * s + t, 0.0)
        return jnp.maximum(z @ wb + bb, 0.0)

    h = conv(x, params["w1a"], params["b1a"], params["s1"], params["t1"],
             params["w1b"], params["b1b"])
    h = conv(h, params["w2a"], params["b2a"], params["s2"], params["t2"],
             params["w2b"], params["b2b"])
    h = conv(h, params["w3a"], params["b3a"], params["s3"], params["t3"],
             params["w3b"], params["b3b"])
    node_ids = jnp.arange(x.shape[0])[None, :]
    seg = ((node_ids >= batch_ptr[:-1][:, None]) &
           (node_ids < batch_ptr[1:][:, None])).astype(jnp.float32)
    return seg @ h


if __name__ == "__main__":
    N, INS, HIDDEN, OUTS, G = 16, 8, 32, 16, 2

    key = jax.random.PRNGKey(0)
    kx, kadj, kparams = jax.random.split(key, 3)

    x = jax.random.normal(kx, (N, INS), jnp.float32)

    # Deterministic symmetric 0/1 adjacency without self-loops.
    rand = jax.random.uniform(kadj, (N, N))
    adj = (rand < 0.3).astype(jnp.float32)
    adj = jnp.maximum(adj, adj.T) * (1.0 - jnp.eye(N, dtype=jnp.float32))

    # CSR-style graph pointer (segment_csr indptr): two graphs of 8 nodes each.
    batch_ptr = jnp.array([0, 8, 16], dtype=jnp.int32)

    params = make_params(kparams, INS, HIDDEN, OUTS)

    out = gin_forward(x, adj, batch_ptr, params, num_graphs=G)
    out = jax.block_until_ready(out)
    assert out.shape == (G, OUTS)

    ref = _reference(x, adj, batch_ptr, params, G)
    assert jnp.allclose(out, ref, rtol=0.1, atol=0.1)   # bf16 adjacency/feature tolerance
    print("KERNEL_OK")
</pallas_src>

<mosaic_0001>
module attributes {stable_mosaic.version = 11 : i64} {
  func.func @_gin_layer_kernel(%arg0: i32, %arg1: i32, %arg2: memref<1xi32, #tpu.memory_space<smem>>, %arg3: memref<1xi32, #tpu.memory_space<smem>>, %arg4: memref<128x128xbf16, #tpu.memory_space<vmem>>, %arg5: memref<128x128xbf16, #tpu.memory_space<vmem>>, %arg6: memref<128x128xf32, #tpu.memory_space<vmem>>, %arg7: memref<1x128xf32, #tpu.memory_space<vmem>>, %arg8: memref<1x128xf32, #tpu.memory_space<vmem>>, %arg9: memref<1x128xf32, #tpu.memory_space<vmem>>, %arg10: memref<128x128xf32, #tpu.memory_space<vmem>>, %arg11: memref<1x128xf32, #tpu.memory_space<vmem>>, %arg12: memref<128x128xbf16, #tpu.memory_space<vmem>>, %arg13: memref<128x128xf32, #tpu.memory_space<vmem>>) attributes {dimension_semantics = [#tpu.dimension_semantics<parallel>, #tpu.dimension_semantics<arbitrary>], iteration_bounds = array<i64: 1, 1>, scalar_prefetch = 2 : i64, scratch_operands = 1 : i64, tpu.core_type = #tpu.core_type<tc>, window_params = [{transform_indices = @transform_0, window_bounds = array<i64: 128, 128>}, {pipeline_mode = #tpu.pipeline_mode<synchronous>, transform_indices = @transform_1, window_bounds = array<i64: 128, 128>}, {pipeline_mode = #tpu.pipeline_mode<synchronous>, transform_indices = @transform_2, window_bounds = array<i64: 128, 128>}, {pipeline_mode = #tpu.pipeline_mode<synchronous>, transform_indices = @transform_3, window_bounds = array<i64: 1, 128>}, {pipeline_mode = #tpu.pipeline_mode<synchronous>, transform_indices = @transform_4, window_bounds = array<i64: 1, 128>}, {pipeline_mode = #tpu.pipeline_mode<synchronous>, transform_indices = @transform_5, window_bounds = array<i64: 1, 128>}, {pipeline_mode = #tpu.pipeline_mode<synchronous>, transform_indices = @transform_6, window_bounds = array<i64: 128, 128>}, {pipeline_mode = #tpu.pipeline_mode<synchronous>, transform_indices = @transform_7, window_bounds = array<i64: 1, 128>}, {transform_indices = @transform_8, window_bounds = array<i64: 128, 128>}]} {
    %c0_i32 = arith.constant 0 : i32
    %0 = arith.cmpi eq, %arg1, %c0_i32 : i32
    %1 = arith.extui %0 : i1 to i32
    %c0_i32_0 = arith.constant 0 : i32
    %2 = arith.cmpi ne, %1, %c0_i32_0 : i32
    scf.if %2 {
      %cst = arith.constant 0.000000e+00 : f32
      %13 = vector.broadcast %cst : f32 to vector<128x128xf32>
      %c0 = arith.constant 0 : index
      %c0_5 = arith.constant 0 : index
      %14 = vector.load %arg13[%c0, %c0_5] : memref<128x128xf32, #tpu.memory_space<vmem>>, vector<128x128xf32>
      tpu.vector_store %arg13[%c0, %c0_5], %13 {strides = array<i32>} : memref<128x128xf32, #tpu.memory_space<vmem>>, vector<128x128xf32>,
    } else {
    }
    %c1_i32 = arith.constant 1 : i32
    %3 = arith.muli %arg0, %c1_i32 : i32
    %4 = arith.addi %3, %arg1 : i32
    %5 = arith.index_cast %4 : i32 to index
    %6 = memref.load %arg3[%5] : memref<1xi32, #tpu.memory_space<smem>>
    %c0_i32_1 = arith.constant 0 : i32
    %7 = arith.cmpi ne, %6, %c0_i32_1 : i32
    %8 = arith.extui %7 : i1 to i32
    %c0_i32_2 = arith.constant 0 : i32
    %9 = arith.cmpi ne, %8, %c0_i32_2 : i32
    scf.if %9 {
      %c128_i32 = arith.constant 128 : i32
      %13 = arith.muli %arg1, %c128_i32 : i32
      %14 = tpu.assume_multiple %13, 128 : i32
      %c0 = arith.constant 0 : index
      %c0_5 = arith.constant 0 : index
      %15 = vector.load %arg13[%c0, %c0_5] : memref<128x128xf32, #tpu.memory_space<vmem>>, vector<128x128xf32>
      %c0_6 = arith.constant 0 : index
      %c0_7 = arith.constant 0 : index
      %16 = vector.load %arg4[%c0_6, %c0_7] : memref<128x128xbf16, #tpu.memory_space<vmem>>, vector<128x128xbf16>
      %17 = arith.index_cast %14 : i32 to index
      %c0_8 = arith.constant 0 : index
      %18 = vector.load %arg5[%17, %c0_8] : memref<128x128xbf16, #tpu.memory_space<vmem>>, vector<128x128xbf16>
      %cst = arith.constant dense<0.000000e+00> : vector<128x128xf32>
      %19 = tpu.matmul %16, %18, %cst {dimension_numbers = #tpu.dot_dimension_numbers<[1], [0], [0], [1], [0, 0, 1, 1], [], []>} : vector<128x128xbf16>, vector<128x128xbf16>, vector<128x128xf32> -> vector<128x128xf32>
      %20 = arith.addf %15, %19 : vector<128x128xf32>
      %c0_9 = arith.constant 0 : index
      %c0_10 = arith.constant 0 : index
      %21 = vector.load %arg13[%c0_9, %c0_10] : memref<128x128xf32, #tpu.memory_space<vmem>>, vector<128x128xf32>
      tpu.vector_store %arg13[%c0_9, %c0_10], %20 {strides = array<i32>} : memref<128x128xf32, #tpu.memory_space<vmem>>, vector<128x128xf32>,
    } else {
    }
    %c0_i32_3 = arith.constant 0 : i32
    %10 = arith.cmpi eq, %arg1, %c0_i32_3 : i32
    %11 = arith.extui %10 : i1 to i32
    %c0_i32_4 = arith.constant 0 : i32
    %12 = arith.cmpi ne, %11, %c0_i32_4 : i32
    scf.if %12 {
      %c0 = arith.constant 0 : index
      %c0_5 = arith.constant 0 : index
      %13 = vector.load %arg13[%c0, %c0_5] : memref<128x128xf32, #tpu.memory_space<vmem>>, vector<128x128xf32>
      %c0_6 = arith.constant 0 : index
      %c0_7 = arith.constant 0 : index
      %14 = vector.load %arg6[%c0_6, %c0_7] : memref<128x128xf32, #tpu.memory_space<vmem>>, vector<128x128xf32>
      %cst = arith.constant dense<0.000000e+00> : vector<128x128xf32>
      %15 = tpu.matmul %13, %14, %cst {dimension_numbers = #tpu.dot_dimension_numbers<[1], [0], [0], [1], [0, 0, 1, 1], [], []>} : vector<128x128xf32>, vector<128x128xf32>, vector<128x128xf32> -> vector<128x128xf32>
      %c0_8 = arith.constant 0 : index
      %c0_9 = arith.constant 0 : index
      %16 = vector.load %arg7[%c0_8, %c0_9] : memref<1x128xf32, #tpu.memory_space<vmem>>, vector<1x128xf32>
      %17 = vector.broadcast %16 : vector<1x128xf32> to vector<128x128xf32>
      %18 = arith.addf %15, %17 : vector<128x128xf32>
      %c0_10 = arith.constant 0 : index
      %c0_11 = arith.constant 0 : index
      %19 = vector.load %arg8[%c0_10, %c0_11] : memref<1x128xf32, #tpu.memory_space<vmem>>, vector<1x128xf32>
      %20 = vector.broadcast %19 : vector<1x128xf32> to vector<128x128xf32>
      %21 = arith.mulf %18, %20 : vector<128x128xf32>
      %c0_12 = arith.constant 0 : index
      %c0_13 = arith.constant 0 : index
      %22 = vector.load %arg9[%c0_12, %c0_13] : memref<1x128xf32, #tpu.memory_space<vmem>>, vector<1x128xf32>
      %23 = vector.broadcast %22 : vector<1x128xf32> to vector<128x128xf32>
      %24 = arith.addf %21, %23 : vector<128x128xf32>
      %cst_14 = arith.constant 0.000000e+00 : f32
      %25 = vector.broadcast %cst_14 : f32 to vector<128x128xf32>
      %26 = arith.maximumf %24, %25 : vector<128x128xf32>
      %c0_15 = arith.constant 0 : index
      %c0_16 = arith.constant 0 : index
      %27 = vector.load %arg10[%c0_15, %c0_16] : memref<128x128xf32, #tpu.memory_space<vmem>>, vector<128x128xf32>
      %cst_17 = arith.constant dense<0.000000e+00> : vector<128x128xf32>
      %28 = tpu.matmul %26, %27, %cst_17 {dimension_numbers = #tpu.dot_dimension_numbers<[1], [0], [0], [1], [0, 0, 1, 1], [], []>} : vector<128x128xf32>, vector<128x128xf32>, vector<128x128xf32> -> vector<128x128xf32>
      %c0_18 = arith.constant 0 : index
      %c0_19 = arith.constant 0 : index
      %29 = vector.load %arg11[%c0_18, %c0_19] : memref<1x128xf32, #tpu.memory_space<vmem>>, vector<1x128xf32>
      %30 = vector.broadcast %29 : vector<1x128xf32> to vector<128x128xf32>
      %31 = arith.addf %28, %30 : vector<128x128xf32>
      %cst_20 = arith.constant 0.000000e+00 : f32
      %32 = vector.broadcast %cst_20 : f32 to vector<128x128xf32>
      %33 = arith.maximumf %31, %32 : vector<128x128xf32>
      %34 = arith.truncf %33 : vector<128x128xf32> to vector<128x128xbf16>
      %c0_21 = arith.constant 0 : index
      %c0_22 = arith.constant 0 : index
      %35 = vector.load %arg12[%c0_21, %c0_22] : memref<128x128xbf16, #tpu.memory_space<vmem>>, vector<128x128xbf16>
      tpu.vector_store %arg12[%c0_21, %c0_22], %34 {strides = array<i32>} : memref<128x128xbf16, #tpu.memory_space<vmem>>, vector<128x128xbf16>,
    } else {
    }
    return
  }
  func.func @transform_0(%arg0: i32, %arg1: i32, %arg2: memref<1xi32, #tpu.memory_space<smem>>, %arg3: memref<1xi32, #tpu.memory_space<smem>>) -> (i32, i32) {
    %c1_i32 = arith.constant 1 : i32
    %0 = arith.muli %arg0, %c1_i32 : i32
    %1 = arith.addi %0, %arg1 : i32
    %2 = arith.index_cast %1 : i32 to index
    %3 = memref.load %arg2[%2] : memref<1xi32, #tpu.memory_space<smem>>
    %c0_i32 = arith.constant 0 : i32
    return %arg0, %3 : i32, i32
  }
  func.func @transform_1(%arg0: i32, %arg1: i32, %arg2: memref<1xi32, #tpu.memory_space<smem>>, %arg3: memref<1xi32, #tpu.memory_space<smem>>) -> (i32, i32) {
    %c0_i32 = arith.constant 0 : i32
    %c0_i32_0 = arith.constant 0 : i32
    %c0_i32_1 = arith.constant 0 : i32
    return %c0_i32, %c0_i32_0 : i32, i32
  }
  func.func @transform_2(%arg0: i32, %arg1: i32, %arg2: memref<1xi32, #tpu.memory_space<smem>>, %arg3: memref<1xi32, #tpu.memory_space<smem>>) -> (i32, i32) {
    %c0_i32 = arith.constant 0 : i32
    %c0_i32_0 = arith.constant 0 : i32
    %c0_i32_1 = arith.constant 0 : i32
    return %c0_i32, %c0_i32_0 : i32, i32
  }
  func.func @transform_3(%arg0: i32, %arg1: i32, %arg2: memref<1xi32, #tpu.memory_space<smem>>, %arg3: memref<1xi32, #tpu.memory_space<smem>>) -> (i32, i32) {
    %c0_i32 = arith.constant 0 : i32
    %c0_i32_0 = arith.constant 0 : i32
    %c0_i32_1 = arith.constant 0 : i32
    return %c0_i32, %c0_i32_0 : i32, i32
  }
  func.func @transform_4(%arg0: i32, %arg1: i32, %arg2: memref<1xi32, #tpu.memory_space<smem>>, %arg3: memref<1xi32, #tpu.memory_space<smem>>) -> (i32, i32) {
    %c0_i32 = arith.constant 0 : i32
    %c0_i32_0 = arith.constant 0 : i32
    %c0_i32_1 = arith.constant 0 : i32
    return %c0_i32, %c0_i32_0 : i32, i32
  }
  func.func @transform_5(%arg0: i32, %arg1: i32, %arg2: memref<1xi32, #tpu.memory_space<smem>>, %arg3: memref<1xi32, #tpu.memory_space<smem>>) -> (i32, i32) {
    %c0_i32 = arith.constant 0 : i32
    %c0_i32_0 = arith.constant 0 : i32
    %c0_i32_1 = arith.constant 0 : i32
    return %c0_i32, %c0_i32_0 : i32, i32
  }
  func.func @transform_6(%arg0: i32, %arg1: i32, %arg2: memref<1xi32, #tpu.memory_space<smem>>, %arg3: memref<1xi32, #tpu.memory_space<smem>>) -> (i32, i32) {
    %c0_i32 = arith.constant 0 : i32
    %c0_i32_0 = arith.constant 0 : i32
    %c0_i32_1 = arith.constant 0 : i32
    return %c0_i32, %c0_i32_0 : i32, i32
  }
  func.func @transform_7(%arg0: i32, %arg1: i32, %arg2: memref<1xi32, #tpu.memory_space<smem>>, %arg3: memref<1xi32, #tpu.memory_space<smem>>) -> (i32, i32) {
    %c0_i32 = arith.constant 0 : i32
    %c0_i32_0 = arith.constant 0 : i32
    %c0_i32_1 = arith.constant 0 : i32
    return %c0_i32, %c0_i32_0 : i32, i32
  }
  func.func @transform_8(%arg0: i32, %arg1: i32, %arg2: memref<1xi32, #tpu.memory_space<smem>>, %arg3: memref<1xi32, #tpu.memory_space<smem>>) -> (i32, i32) {
    %c0_i32 = arith.constant 0 : i32
    %c0_i32_0 = arith.constant 0 : i32
    return %arg0, %c0_i32 : i32, i32
  }
}

</mosaic_0001>

<llo_original>
// kernel: tpu_custom_call.1
$region0: #{tpu_custom_call.1}
  #allocation0 [shape = 'u32[]', space=smem, size = 0x4, offset = 0x4, fixed_abs, tag = 'smem constant byte address 0x4 - core index']
  #allocation1 [shape = 'u32[144,128]{1,0:T(1,128)}', space=vmem, size = 0x12000, scoped, tag = 'internal scratch']
  #allocation2 [shape = 'f32[128,128]{1,0:T(8,128)}', space=vmem, size = 0x10000, scoped, tag = 'scratch operand']
  #allocation3 [shape = 's32[1]{0}', space=sflag, size = 0x4, scoped, tag = 'scoped memory for tpu_custom_call.1']
  #allocation4 [shape = 's32[1]{0:T(128)S(6)}', space=smem, size = 0x200, scoped, tag = 'prefetched SMEM operand 0']
  #allocation5 [shape = 's32[1]{0:T(128)S(6)}', space=smem, size = 0x200, scoped, tag = 'prefetched SMEM operand 1']
  %s0 = inlined_call_operand.<no memory space> [shape: s32[1], index: 0, kind: input, shape index: {}]
  %s1 = inlined_call_operand.<no memory space> [shape: s32[1], index: 1, kind: input, shape index: {}]
  %s2 = inlined_call_operand.hbm [shape: bf16[128,128], index: 2, kind: input, shape index: {}]
  %s3 = inlined_call_operand.hbm [shape: bf16[128,128], index: 3, kind: input, shape index: {}]
  %s4 = inlined_call_operand.hbm [shape: f32[128,128], index: 4, kind: input, shape index: {}]
  %s5 = inlined_call_operand.vmem [shape: f32[1,128], index: 5, kind: input, shape index: {}]
  %s6 = inlined_call_operand.vmem [shape: f32[1,128], index: 6, kind: input, shape index: {}]
  %s7 = inlined_call_operand.vmem [shape: f32[1,128], index: 7, kind: input, shape index: {}]
  %s8 = inlined_call_operand.hbm [shape: f32[128,128], index: 8, kind: input, shape index: {}]
  %s9 = inlined_call_operand.vmem [shape: f32[1,128], index: 9, kind: input, shape index: {}]
  %s10 = inlined_call_operand.hbm [shape: bf16[128,128], index: 10, kind: output, shape index: {}]
  %s11 = sld [smem:[#allocation0]]
  $region70: #{tpu_custom_call.1} parent=0
    _
  %s13 = ssub.s32 1, %s11
  %s14 = scalar_select 0, %s13, %s11
  %15 = sst [smem:[#allocation4]] %s0
  %16 = sst [smem:[#allocation5]] %s1
  $region1: #{tpu_custom_call.1} parent=0
    #allocation6 [shape = 'u8[32768]{0}', space=vmem, size = 0x8000, scoped, tag = 'input window, operand 2, single buffered']
    #allocation7 [shape = 's32[1]{0}', space=sflag, size = 0x4, scoped, tag = 'scoped memory for tpu_custom_call.1']
    #allocation8 [shape = 's32[1]{0}', space=sflag, size = 0x4, scoped, tag = 'scoped memory for tpu_custom_call.1']
    #allocation9 [shape = 'u8[32768]{0}', space=vmem, size = 0x8000, scoped, tag = 'input window, operand 3, single buffered']
    #allocation10 [shape = 's32[1]{0}', space=sflag, size = 0x4, scoped, tag = 'scoped memory for tpu_custom_call.1']
    #allocation11 [shape = 'u8[65536]{0}', space=vmem, size = 0x10000, scoped, tag = 'input window, operand 4, single buffered']
    #allocation12 [shape = 'u8[65536]{0}', space=vmem, size = 0x10000, scoped, tag = 'input window, operand 8, single buffered']
    #allocation13 [shape = 's32[1]{0}', space=sflag, size = 0x4, scoped, tag = 'scoped memory for tpu_custom_call.1']
    #allocation14 [shape = 'u8[32768]{0}', space=vmem, size = 0x8000, scoped, tag = 'output window, operand 0, single buffered']
    %17 = vsyncpa [#allocation7], 0
    %18 = vsyncpa [#allocation10], 0
    %19 = vsyncpa [#allocation13], 0
    %20 = vsyncpa [#allocation8], 0
    // Predicated region
    $region2: #{tpu_custom_call.1} parent=1 // pred_check
      _
    $region3: #{tpu_custom_call.1} parent=1 // pred_check_branch
      %22 = sbr.rel (0) target = $region5
    $region4: #{tpu_custom_call.1} parent=1 // pred_region
      %s23 = sadd.s32 0, 0
      %s24 = sld [smem:[#allocation4 + %s23]]
      %s26 = ssub.s32 1024, 1024
      %27 = vsyncadd [#allocation7], %s26
      %s28 = smul.addr %s24, 64
      %s29 = scalar_lea.hbm %s2, %s28
      %s30 = sshll.u32 [#allocation6], 4
      %s31 = int_to_ptr.vmem [resolvable:$true] %s30
      %36 = dma.hbm_to_vmem [thread:$0]  %s29, 1024, %s31, [#allocation7], 64, 64, 4
    $region5: #{tpu_custom_call.1} parent=1 // pred_fallthru
      _
    // Predicated region
    $region6: #{tpu_custom_call.1} parent=1 // pred_check
      _
    $region7: #{tpu_custom_call.1} parent=1 // pred_check_branch
      %38 = sbr.rel (0) target = $region9
    $region8: #{tpu_custom_call.1} parent=1 // pred_region
      %s40 = ssub.s32 1024, 1024
      %41 = vsyncadd [#allocation10], %s40
      %s42 = sshll.u32 [#allocation9], 4
      %s43 = int_to_ptr.vmem [resolvable:$true] %s42
      %48 = dma.hbm_to_vmem [thread:$0]  %s3, 1024, %s43, [#allocation10], 64, 64, 4
    $region9: #{tpu_custom_call.1} parent=1 // pred_fallthru
      _
    // Predicated region
    $region10: #{tpu_custom_call.1} parent=1 // pred_check
      _
    $region11: #{tpu_custom_call.1} parent=1 // pred_check_branch
      %50 = sbr.rel (0) target = $region13
    $region12: #{tpu_custom_call.1} parent=1 // pred_region
      %s52 = ssub.s32 2048, 2048
      %53 = vsyncadd [#allocation10], %s52
      %s54 = sshll.u32 [#allocation11], 4
      %s55 = int_to_ptr.vmem [resolvable:$true] %s54
      %60 = dma.hbm_to_vmem [thread:$0]  %s4, 2048, %s55, [#allocation10], 128, 128, 8
    $region13: #{tpu_custom_call.1} parent=1 // pred_fallthru
      _
    // Predicated region
    $region14: #{tpu_custom_call.1} parent=1 // pred_check
      _
    $region15: #{tpu_custom_call.1} parent=1 // pred_check_branch
      %62 = sbr.rel (0) target = $region17
    $region16: #{tpu_custom_call.1} parent=1 // pred_region
      _
    $region17: #{tpu_custom_call.1} parent=1 // pred_fallthru
      _
    // Predicated region
    $region18: #{tpu_custom_call.1} parent=1 // pred_check
      _
    $region19: #{tpu_custom_call.1} parent=1 // pred_check_branch
      %64 = sbr.rel (0) target = $region21
    $region20: #{tpu_custom_call.1} parent=1 // pred_region
      _
    $region21: #{tpu_custom_call.1} parent=1 // pred_fallthru
      _
    // Predicated region
    $region22: #{tpu_custom_call.1} parent=1 // pred_check
      _
    $region23: #{tpu_custom_call.1} parent=1 // pred_check_branch
      %66 = sbr.rel (0) target = $region25
    $region24: #{tpu_custom_call.1} parent=1 // pred_region
      _
    $region25: #{tpu_custom_call.1} parent=1 // pred_fallthru
      _
    // Predicated region
    $region26: #{tpu_custom_call.1} parent=1 // pred_check
      _
    $region27: #{tpu_custom_call.1} parent=1 // pred_check_branch
      %68 = sbr.rel (0) target = $region29
    $region28: #{tpu_custom_call.1} parent=1 // pred_region
      %s70 = ssub.s32 2048, 2048
      %71 = vsyncadd [#allocation13], %s70
      %s72 = sshll.u32 [#allocation12], 4
      %s73 = int_to_ptr.vmem [resolvable:$true] %s72
      %78 = dma.hbm_to_vmem [thread:$0]  %s8, 2048, %s73, [#allocation13], 128, 128, 8
    $region29: #{tpu_custom_call.1} parent=1 // pred_fallthru
      _
    // Predicated region
    $region30: #{tpu_custom_call.1} parent=1 // pred_check
      _
    $region31: #{tpu_custom_call.1} parent=1 // pred_check_branch
      %80 = sbr.rel (0) target = $region33
    $region32: #{tpu_custom_call.1} parent=1 // pred_region
      _
    $region33: #{tpu_custom_call.1} parent=1 // pred_fallthru
      _
    // Predicated region
    $region34: #{tpu_custom_call.1} parent=1 // pred_check
      _
    $region35: #{tpu_custom_call.1} parent=1 // pred_check_branch
      %82 = sbr.rel (0) target = $region37
    $region36: #{tpu_custom_call.1} parent=1 // pred_region
      %83 = dma.done [#allocation7], 1024
    $region37: #{tpu_custom_call.1} parent=1 // pred_fallthru
      _
    // Predicated region
    $region38: #{tpu_custom_call.1} parent=1 // pred_check
      _
    $region39: #{tpu_custom_call.1} parent=1 // pred_check_branch
      %85 = sbr.rel (0) target = $region41
    $region40: #{tpu_custom_call.1} parent=1 // pred_region
      %86 = dma.done [#allocation10], 1024
    $region41: #{tpu_custom_call.1} parent=1 // pred_fallthru
      _
    // Predicated region
    $region42: #{tpu_custom_call.1} parent=1 // pred_check
      _
    $region43: #{tpu_custom_call.1} parent=1 // pred_check_branch
      %88 = sbr.rel (0) target = $region45
    $region44: #{tpu_custom_call.1} parent=1 // pred_region
      %89 = dma.done [#allocation10], 2048
    $region45: #{tpu_custom_call.1} parent=1 // pred_fallthru
      _
    // Predicated region
    $region46: #{tpu_custom_call.1} parent=1 // pred_check
      _
    $region47: #{tpu_custom_call.1} parent=1 // pred_check_branch
      %91 = sbr.rel (0) target = $region49
    $region48: #{tpu_custom_call.1} parent=1 // pred_region
      %92 = dma.done [#allocation13], 2048
    $region49: #{tpu_custom_call.1} parent=1 // pred_fallthru
      _
    %s93 = sadd.s32 0, 0
    %s94 = sld [smem:[#allocation4 + %s93]]
    %p96 = scmp.eq.s32.totalorder 0, 0
    // Predicated region
    $region50: #{tpu_custom_call.1} parent=1 // pred_check
      %p97 = pneg %p96
    $region51: #{tpu_custom_call.1} parent=1 // pred_check_branch
      %99 = sbr.rel (%p97) target = $region53
    $region52: #{tpu_custom_call.1} parent=1 // pred_region
      %100 = vst [vmem:[#allocation2] sm:$0xff] 0.0
      %101 = vst [vmem:[#allocation2 + $0x8] sm:$0xff] 0.0
      %102 = vst [vmem:[#allocation2 + $0x10] sm:$0xff] 0.0
      %103 = vst [vmem:[#allocation2 + $0x18] sm:$0xff] 0.0
      %104 = vst [vmem:[#allocation2 + $0x20] sm:$0xff] 0.0
      %105 = vst [vmem:[#allocation2 + $0x28] sm:$0xff] 0.0
      %106 = vst [vmem:[#allocation2 + $0x30] sm:$0xff] 0.0
      %107 = vst [vmem:[#allocation2 + $0x38] sm:$0xff] 0.0
      %108 = vst [vmem:[#allocation2 + $0x40] sm:$0xff] 0.0
      %109 = vst [vmem:[#allocation2 + $0x48] sm:$0xff] 0.0
      %110 = vst [vmem:[#allocation2 + $0x50] sm:$0xff] 0.0
      %111 = vst [vmem:[#allocation2 + $0x58] sm:$0xff] 0.0
      %112 = vst [vmem:[#allocation2 + $0x60] sm:$0xff] 0.0
      %113 = vst [vmem:[#allocation2 + $0x68] sm:$0xff] 0.0
      %114 = vst [vmem:[#allocation2 + $0x70] sm:$0xff] 0.0
      %115 = vst [vmem:[#allocation2 + $0x78] sm:$0xff] 0.0
    $region53: #{tpu_custom_call.1} parent=1 // pred_fallthru
      _
    %s116 = sadd.s32 0, 0
    %s117 = sld [smem:[#allocation5 + %s116]]
    %p118 = scmp.ne.s32.totalorder %s117, 0
    // Predicated region
    $region54: #{tpu_custom_call.1} parent=1 // pred_check
      %p119 = pneg %p118
    $region55: #{tpu_custom_call.1} parent=1 // pred_check_branch
      %121 = sbr.rel (%p119) target = $region57
    $region56: #{tpu_custom_call.1} parent=1 // pred_region
      %s122 = smul.u32 0, 128
      %v123 = vld [vmem:[#allocation2] sm:$0xff]
      %v124 = vld [vmem:[#allocation2 + $0x8] sm:$0xff]
      %v125 = vld [vmem:[#allocation2 + $0x10] sm:$0xff]
      %v126 = vld [vmem:[#allocation2 + $0x18] sm:$0xff]
      %v127 = vld [vmem:[#allocation2 + $0x20] sm:$0xff]
      %v128 = vld [vmem:[#allocation2 + $0x28] sm:$0xff]
      %v129 = vld [vmem:[#allocation2 + $0x30] sm:$0xff]
      %v130 = vld [vmem:[#allocation2 + $0x38] sm:$0xff]
      %v131 = vld [vmem:[#allocation2 + $0x40] sm:$0xff]
      %v132 = vld [vmem:[#allocation2 + $0x48] sm:$0xff]
      %v133 = vld [vmem:[#allocation2 + $0x50] sm:$0xff]
      %v134 = vld [vmem:[#allocation2 + $0x58] sm:$0xff]
      %v135 = vld [vmem:[#allocation2 + $0x60] sm:$0xff]
      %v136 = vld [vmem:[#allocation2 + $0x68] sm:$0xff]
      %v137 = vld [vmem:[#allocation2 + $0x70] sm:$0xff]
      %v138 = vld [vmem:[#allocation2 + $0x78] sm:$0xff]
      %v139 = vld [vmem:[#allocation6] sm:$0xf]
      %v140 = vld [vmem:[#allocation6 + $0x4] sm:$0xf]
      %v141 = vld [vmem:[#allocation6 + $0x8] sm:$0xf]
      %v142 = vld [vmem:[#allocation6 + $0xc] sm:$0xf]
      %v143 = vld [vmem:[#allocation6 + $0x10] sm:$0xf]
      %v144 = vld [vmem:[#allocation6 + $0x14] sm:$0xf]
      %v145 = vld [vmem:[#allocation6 + $0x18] sm:$0xf]
      %v146 = vld [vmem:[#allocation6 + $0x1c] sm:$0xf]
      %v147 = vld [vmem:[#allocation6 + $0x20] sm:$0xf]
      %v148 = vld [vmem:[#allocation6 + $0x24] sm:$0xf]
      %v149 = vld [vmem:[#allocation6 + $0x28] sm:$0xf]
      %v150 = vld [vmem:[#allocation6 + $0x2c] sm:$0xf]
      %v151 = vld [vmem:[#allocation6 + $0x30] sm:$0xf]
      %v152 = vld [vmem:[#allocation6 + $0x34] sm:$0xf]
      %v153 = vld [vmem:[#allocation6 + $0x38] sm:$0xf]
      %v154 = vld [vmem:[#allocation6 + $0x3c] sm:$0xf]
      %s155 = sshra.s32 %s122, 3
      %s156 = sand.u32 %s122, 7
      %s157 = smul.addr %s155, 4
      %s158 = scalar_lea.vmem [#allocation9], %s157
      %v159 = vld [vmem:[%s158] sm:$0xf]
      %v160 = vld [vmem:[%s158 + $0x4] sm:$0xf]
      %v161 = vld [vmem:[%s158 + $0x8] sm:$0xf]
      %v162 = vld [vmem:[%s158 + $0xc] sm:$0xf]
      %v163 = vld [vmem:[%s158 + $0x10] sm:$0xf]
      %v164 = vld [vmem:[%s158 + $0x14] sm:$0xf]
      %v165 = vld [vmem:[%s158 + $0x18] sm:$0xf]
      %v166 = vld [vmem:[%s158 + $0x1c] sm:$0xf]
      %v167 = vld [vmem:[%s158 + $0x20] sm:$0xf]
      %v168 = vld [vmem:[%s158 + $0x24] sm:$0xf]
      %v169 = vld [vmem:[%s158 + $0x28] sm:$0xf]
      %v170 = vld [vmem:[%s158 + $0x2c] sm:$0xf]
      %v171 = vld [vmem:[%s158 + $0x30] sm:$0xf]
      %v172 = vld [vmem:[%s158 + $0x34] sm:$0xf]
      %v173 = vld [vmem:[%s158 + $0x38] sm:$0xf]
      %v174 = vld [vmem:[%s158 + $0x3c] sm:$0xf]
      %v191 = vunpack.c.l.b16 %v139
      %v192 = vunpack.c.l.b16 %v140
      %v193 = vunpack.c.l.b16 %v141
      %v194 = vunpack.c.l.b16 %v142
      %v195 = vunpack.c.l.b16 %v143
      %v196 = vunpack.c.l.b16 %v144
      %v197 = vunpack.c.l.b16 %v145
      %v198 = vunpack.c.l.b16 %v146
      %v199 = vunpack.c.l.b16 %v147
      %v200 = vunpack.c.l.b16 %v148
      %v201 = vunpack.c.l.b16 %v149
      %v202 = vunpack.c.l.b16 %v150
      %v203 = vunpack.c.l.b16 %v151
      %v204 = vunpack.c.l.b16 %v152
      %v205 = vunpack.c.l.b16 %v153
      %v206 = vunpack.c.l.b16 %v154
      %v207 = vpack.c.b16 %v192, %v191
      %v208 = vpack.c.b16 %v194, %v193
      %v209 = vpack.c.b16 %v196, %v195
      %v210 = vpack.c.b16 %v198, %v197
      %v211 = vpack.c.b16 %v200, %v199
      %v212 = vpack.c.b16 %v202, %v201
      %v213 = vpack.c.b16 %v204, %v203
      %v214 = vpack.c.b16 %v206, %v205
      %v239 = vunpack.c.l.b16 %v159
      %v240 = vunpack.c.l.b16 %v160
      %v241 = vunpack.c.l.b16 %v161
      %v242 = vunpack.c.l.b16 %v162
      %v243 = vunpack.c.l.b16 %v163
      %v244 = vunpack.c.l.b16 %v164
      %v245 = vunpack.c.l.b16 %v165
      %v246 = vunpack.c.l.b16 %v166
      %v247 = vunpack.c.l.b16 %v167
      %v248 = vunpack.c.l.b16 %v168
      %v249 = vunpack.c.l.b16 %v169
      %v250 = vunpack.c.l.b16 %v170
      %v251 = vunpack.c.l.b16 %v171
      %v252 = vunpack.c.l.b16 %v172
      %v253 = vunpack.c.l.b16 %v173
      %v254 = vunpack.c.l.b16 %v174
      %v255 = vpack.c.b16 %v240, %v239
      %v256 = vpack.c.b16 %v242, %v241
      %v257 = vpack.c.b16 %v244, %v243
      %v258 = vpack.c.b16 %v246, %v245
      %v259 = vpack.c.b16 %v248, %v247
      %v260 = vpack.c.b16 %v250, %v249
      %v261 = vpack.c.b16 %v252, %v251
      %v262 = vpack.c.b16 %v254, %v253
      %271 = vmatprep.subr.bf16.mxu0 0
      %272 = vmatpush1.bf16.msra.mxu0 %v262
      %273 = vmatprep.subr.bf16.mxu0 0
      %274 = vmatpush1.bf16.msra.mxu0 %v261
      %275 = vmatprep.subr.bf16.mxu0 0
      %276 = vmatpush1.bf16.msra.mxu0 %v260
      %277 = vmatprep.subr.bf16.mxu0 0
      %278 = vmatpush1.bf16.msra.mxu0 %v259
      %279 = vmatprep.subr.bf16.mxu0 0
      %280 = vmatpush1.bf16.msra.mxu0 %v258
      %281 = vmatprep.subr.bf16.mxu0 0
      %282 = vmatpush1.bf16.msra.mxu0 %v257
      %283 = vmatprep.subr.bf16.mxu0 0
      %284 = vmatpush1.bf16.msra.mxu0 %v256
      %285 = vmatprep.subr.bf16.mxu0 0
      %286 = vmatpush1.bf16.msra.mxu0 %v255
      %287 = vmatprep.subr.bf16.mxu0 0
      %288 = vmatpush2.bf16.msra.mxu0 0
      %289 = vmatprep.subr.bf16.mxu0 0
      %290 = vmatpush2.bf16.msra.mxu0 0
      %291 = vmatprep.subr.bf16.mxu0 0
      %292 = vmatpush2.bf16.msra.mxu0 0
      %293 = vmatprep.subr.bf16.mxu0 0
      %294 = vmatpush2.bf16.msra.mxu0 0
      %295 = vmatprep.subr.bf16.mxu0 0
      %296 = vmatpush2.bf16.msra.mxu0 0
      %297 = vmatprep.subr.bf16.mxu0 0
      %298 = vmatpush2.bf16.msra.mxu0 0
      %299 = vmatprep.subr.bf16.mxu0 0
      %300 = vmatpush2.bf16.msra.mxu0 0
      %301 = vmatprep.subr.bf16.mxu0 0
      %302 = vmatpush2.bf16.msra.mxu0 0
      %303 = vmatprep.mubr.bf16.mxu0 0
      %304 = vmatmul.mubr.bf16.gmra.mxu0 %v207
      %v305 = vpop.f32.mrf.mxu0
      %v306 = vadd.f32 0.0, %v305
      %v307 = vpop.f32.mrf.mxu0
      %v308 = vpop.f32.mrf.mxu0
      %v309 = vadd.f32 0.0, %v308
      %v310 = vpop.f32.mrf.mxu0
      %311 = vmatprep.mubr.bf16.mxu0 0
      %312 = vmatmul.mubr.bf16.gmra.mxu0 %v208
      %v313 = vpop.f32.mrf.mxu0
      %v314 = vadd.f32 0.0, %v313
      %v315 = vpop.f32.mrf.mxu0
      %v316 = vpop.f32.mrf.mxu0
      %v317 = vadd.f32 0.0, %v316
      %v318 = vpop.f32.mrf.mxu0
      %319 = vmatprep.mubr.bf16.mxu0 0
      %320 = vmatmul.mubr.bf16.gmra.mxu0 %v209
      %v321 = vpop.f32.mrf.mxu0
      %v322 = vadd.f32 0.0, %v321
      %v323 = vpop.f32.mrf.mxu0
      %v324 = vpop.f32.mrf.mxu0
      %v325 = vadd.f32 0.0, %v324
      %v326 = vpop.f32.mrf.mxu0
      %327 = vmatprep.mubr.bf16.mxu0 0
      %328 = vmatmul.mubr.bf16.gmra.mxu0 %v210
      %v329 = vpop.f32.mrf.mxu0
      %v330 = vadd.f32 0.0, %v329
      %v331 = vpop.f32.mrf.mxu0
      %v332 = vpop.f32.mrf.mxu0
      %v333 = vadd.f32 0.0, %v332
      %v334 = vpop.f32.mrf.mxu0
      %335 = vmatprep.mubr.bf16.mxu0 0
      %336 = vmatmul.mubr.bf16.gmra.mxu0 %v211
      %v337 = vpop.f32.mrf.mxu0
      %v338 = vadd.f32 0.0, %v337
      %v339 = vpop.f32.mrf.mxu0
      %v340 = vpop.f32.mrf.mxu0
      %v341 = vadd.f32 0.0, %v340
      %v342 = vpop.f32.mrf.mxu0
      %343 = vmatprep.mubr.bf16.mxu0 0
      %344 = vmatmul.mubr.bf16.gmra.mxu0 %v212
      %v345 = vpop.f32.mrf.mxu0
      %v346 = vadd.f32 0.0, %v345
      %v347 = vpop.f32.mrf.mxu0
      %v348 = vpop.f32.mrf.mxu0
      %v349 = vadd.f32 0.0, %v348
      %v350 = vpop.f32.mrf.mxu0
      %351 = vmatprep.mubr.bf16.mxu0 0
      %352 = vmatmul.mubr.bf16.gmra.mxu0 %v213
      %v353 = vpop.f32.mrf.mxu0
      %v354 = vadd.f32 0.0, %v353
      %v355 = vpop.f32.mrf.mxu0
      %v356 = vpop.f32.mrf.mxu0
      %v357 = vadd.f32 0.0, %v356
      %v358 = vpop.f32.mrf.mxu0
      %359 = vmatprep.mubr.bf16.mxu0 0
      %360 = vmatmul.mubr.bf16.gmra.mxu0 %v214
      %v361 = vpop.f32.mrf.mxu0
      %v362 = vadd.f32 0.0, %v361
      %v363 = vpop.f32.mrf.mxu0
      %v364 = vpop.f32.mrf.mxu0
      %v365 = vadd.f32 0.0, %v364
      %v366 = vpop.f32.mrf.mxu0
      %367 = vdwg.mxu0
      %v368 = vadd.f32 %v123, %v306
      %v369 = vadd.f32 %v124, %v309
      %v370 = vadd.f32 %v125, %v314
      %v371 = vadd.f32 %v126, %v317
      %v372 = vadd.f32 %v127, %v322
      %v373 = vadd.f32 %v128, %v325
      %v374 = vadd.f32 %v129, %v330
      %v375 = vadd.f32 %v130, %v333
      %v376 = vadd.f32 %v131, %v338
      %v377 = vadd.f32 %v132, %v341
      %v378 = vadd.f32 %v133, %v346
      %v379 = vadd.f32 %v134, %v349
      %v380 = vadd.f32 %v135, %v354
      %v381 = vadd.f32 %v136, %v357
      %v382 = vadd.f32 %v137, %v362
      %v383 = vadd.f32 %v138, %v365
      %384 = vst [vmem:[#allocation2] sm:$0xff] %v368
      %385 = vst [vmem:[#allocation2 + $0x8] sm:$0xff] %v369
      %386 = vst [vmem:[#allocation2 + $0x10] sm:$0xff] %v370
      %387 = vst [vmem:[#allocation2 + $0x18] sm:$0xff] %v371
      %388 = vst [vmem:[#allocation2 + $0x20] sm:$0xff] %v372
      %389 = vst [vmem:[#allocation2 + $0x28] sm:$0xff] %v373
      %390 = vst [vmem:[#allocation2 + $0x30] sm:$0xff] %v374
      %391 = vst [vmem:[#allocation2 + $0x38] sm:$0xff] %v375
      %392 = vst [vmem:[#allocation2 + $0x40] sm:$0xff] %v376
      %393 = vst [vmem:[#allocation2 + $0x48] sm:$0xff] %v377
      %394 = vst [vmem:[#allocation2 + $0x50] sm:$0xff] %v378
      %395 = vst [vmem:[#allocation2 + $0x58] sm:$0xff] %v379
      %396 = vst [vmem:[#allocation2 + $0x60] sm:$0xff] %v380
      %397 = vst [vmem:[#allocation2 + $0x68] sm:$0xff] %v381
      %398 = vst [vmem:[#allocation2 + $0x70] sm:$0xff] %v382
      %399 = vst [vmem:[#allocation2 + $0x78] sm:$0xff] %v383
    $region57: #{tpu_custom_call.1} parent=1 // pred_fallthru
      _
    // Predicated region
    $region58: #{tpu_custom_call.1} parent=1 // pred_check
      %p400 = pneg %p96
    $region59: #{tpu_custom_call.1} parent=1 // pred_check_branch
      %402 = sbr.rel (%p400) target = $region61
    $region60: #{tpu_custom_call.1} parent=1 // pred_region
      %v403 = vld [vmem:[#allocation2] sm:$0xff]
      %v404 = vld [vmem:[#allocation2 + $0x8] sm:$0xff]
      %v405 = vld [vmem:[#allocation2 + $0x10] sm:$0xff]
      %v406 = vld [vmem:[#allocation2 + $0x18] sm:$0xff]
      %v407 = vld [vmem:[#allocation2 + $0x20] sm:$0xff]
      %v408 = vld [vmem:[#allocation2 + $0x28] sm:$0xff]
      %v409 = vld [vmem:[#allocation2 + $0x30] sm:$0xff]
      %v410 = vld [vmem:[#allocation2 + $0x38] sm:$0xff]
      %v411 = vld [vmem:[#allocation2 + $0x40] sm:$0xff]
      %v412 = vld [vmem:[#allocation2 + $0x48] sm:$0xff]
      %v413 = vld [vmem:[#allocation2 + $0x50] sm:$0xff]
      %v414 = vld [vmem:[#allocation2 + $0x58] sm:$0xff]
      %v415 = vld [vmem:[#allocation2 + $0x60] sm:$0xff]
      %v416 = vld [vmem:[#allocation2 + $0x68] sm:$0xff]
      %v417 = vld [vmem:[#allocation2 + $0x70] sm:$0xff]
      %v418 = vld [vmem:[#allocation2 + $0x78] sm:$0xff]
      %v419 = vld [vmem:[#allocation11] sm:$0xff]
      %v420 = vld [vmem:[#allocation11 + $0x8] sm:$0xff]
      %v421 = vld [vmem:[#allocation11 + $0x10] sm:$0xff]
      %v422 = vld [vmem:[#allocation11 + $0x18] sm:$0xff]
      %v423 = vld [vmem:[#allocation11 + $0x20] sm:$0xff]
      %v424 = vld [vmem:[#allocation11 + $0x28] sm:$0xff]
      %v425 = vld [vmem:[#allocation11 + $0x30] sm:$0xff]
      %v426 = vld [vmem:[#allocation11 + $0x38] sm:$0xff]
      %v427 = vld [vmem:[#allocation11 + $0x40] sm:$0xff]
      %v428 = vld [vmem:[#allocation11 + $0x48] sm:$0xff]
      %v429 = vld [vmem:[#allocation11 + $0x50] sm:$0xff]
      %v430 = vld [vmem:[#allocation11 + $0x58] sm:$0xff]
      %v431 = vld [vmem:[#allocation11 + $0x60] sm:$0xff]
      %v432 = vld [vmem:[#allocation11 + $0x68] sm:$0xff]
      %v433 = vld [vmem:[#allocation11 + $0x70] sm:$0xff]
      %v434 = vld [vmem:[#allocation11 + $0x78] sm:$0xff]
      %v435 = vld [vmem:[%s5] sm:$0x1]
      %v437 = vlaneseq
      %v438 = vshrl.u32 %v437, 7
      %v439 = vsub.s32 0, %v438
      %v440 = vrot.slane %v435, %v439
      %442 = vmatprep.subr.mxu0 0.0
      %443 = vmatpush1.msra.mxu0 %v434
      %444 = vmatprep.subr.mxu0 0.0
      %445 = vmatpush1.msra.mxu0 %v433
      %446 = vmatprep.subr.mxu0 0.0
      %447 = vmatpush1.msra.mxu0 %v432
      %448 = vmatprep.subr.mxu0 0.0
      %449 = vmatpush1.msra.mxu0 %v431
      %450 = vmatprep.subr.mxu0 0.0
      %451 = vmatpush1.msra.mxu0 %v430
      %452 = vmatprep.subr.mxu0 0.0
      %453 = vmatpush1.msra.mxu0 %v429
      %454 = vmatprep.subr.mxu0 0.0
      %455 = vmatpush1.msra.mxu0 %v428
      %456 = vmatprep.subr.mxu0 0.0
      %457 = vmatpush1.msra.mxu0 %v427
      %458 = vmatprep.subr.mxu0 0.0
      %459 = vmatpush1.msra.mxu0 %v426
      %460 = vmatprep.subr.mxu0 0.0
      %461 = vmatpush1.msra.mxu0 %v425
      %462 = vmatprep.subr.mxu0 0.0
      %463 = vmatpush1.msra.mxu0 %v424
      %464 = vmatprep.subr.mxu0 0.0
      %465 = vmatpush1.msra.mxu0 %v423
      %466 = vmatprep.subr.mxu0 0.0
      %467 = vmatpush1.msra.mxu0 %v422
      %468 = vmatprep.subr.mxu0 0.0
      %469 = vmatpush1.msra.mxu0 %v421
      %470 = vmatprep.subr.mxu0 0.0
      %471 = vmatpush1.msra.mxu0 %v420
      %472 = vmatprep.subr.mxu0 0.0
      %473 = vmatpush1.msra.mxu0 %v419
      %474 = vmatprep.subr.mxu0 0.0
      %475 = vmatpush2.msra.mxu0 0.0
      %476 = vmatprep.subr.mxu0 0.0
      %477 = vmatpush2.msra.mxu0 0.0
      %478 = vmatprep.subr.mxu0 0.0
      %479 = vmatpush2.msra.mxu0 0.0
      %480 = vmatprep.subr.mxu0 0.0
      %481 = vmatpush2.msra.mxu0 0.0
      %482 = vmatprep.subr.mxu0 0.0
      %483 = vmatpush2.msra.mxu0 0.0
      %484 = vmatprep.subr.mxu0 0.0
      %485 = vmatpush2.msra.mxu0 0.0
      %486 = vmatprep.subr.mxu0 0.0
      %487 = vmatpush2.msra.mxu0 0.0
      %488 = vmatprep.subr.mxu0 0.0
      %489 = vmatpush2.msra.mxu0 0.0
      %490 = vmatprep.subr.mxu0 0.0
      %491 = vmatpush2.msra.mxu0 0.0
      %492 = vmatprep.subr.mxu0 0.0
      %493 = vmatpush2.msra.mxu0 0.0
      %494 = vmatprep.subr.mxu0 0.0
      %495 = vmatpush2.msra.mxu0 0.0
      %496 = vmatprep.subr.mxu0 0.0
      %497 = vmatpush2.msra.mxu0 0.0
      %498 = vmatprep.subr.mxu0 0.0
      %499 = vmatpush2.msra.mxu0 0.0
      %500 = vmatprep.subr.mxu0 0.0
      %501 = vmatpush2.msra.mxu0 0.0
      %502 = vmatprep.subr.mxu0 0.0
      %503 = vmatpush2.msra.mxu0 0.0
      %504 = vmatprep.subr.mxu0 0.0
      %505 = vmatpush2.msra.mxu0 0.0
      %506 = vmatprep.mubr.f32.mxu0 0.0
      %507 = vmatmul.mubr.f32.gmra.mxu0 %v403
      %v508 = vpop.f32.mrf.mxu0
      %v509 = vadd.f32 %v440, %v508
      %v510 = vpop.f32.mrf.mxu0
      %511 = vmatprep.mubr.f32.mxu0 0.0
      %512 = vmatmul.mubr.f32.gmra.mxu0 %v404
      %v513 = vpop.f32.mrf.mxu0
      %v514 = vadd.f32 %v440, %v513
      %v515 = vpop.f32.mrf.mxu0
      %516 = vmatprep.mubr.f32.mxu0 0.0
      %517 = vmatmul.mubr.f32.gmra.mxu0 %v405
      %v518 = vpop.f32.mrf.mxu0
      %v519 = vadd.f32 %v440, %v518
      %v520 = vpop.f32.mrf.mxu0
      %521 = vmatprep.mubr.f32.mxu0 0.0
      %522 = vmatmul.mubr.f32.gmra.mxu0 %v406
      %v523 = vpop.f32.mrf.mxu0
      %v524 = vadd.f32 %v440, %v523
      %v525 = vpop.f32.mrf.mxu0
      %526 = vmatprep.mubr.f32.mxu0 0.0
      %527 = vmatmul.mubr.f32.gmra.mxu0 %v407
      %v528 = vpop.f32.mrf.mxu0
      %v529 = vadd.f32 %v440, %v528
      %v530 = vpop.f32.mrf.mxu0
      %531 = vmatprep.mubr.f32.mxu0 0.0
      %532 = vmatmul.mubr.f32.gmra.mxu0 %v408
      %v533 = vpop.f32.mrf.mxu0
      %v534 = vadd.f32 %v440, %v533
      %v535 = vpop.f32.mrf.mxu0
      %536 = vmatprep.mubr.f32.mxu0 0.0
      %537 = vmatmul.mubr.f32.gmra.mxu0 %v409
      %v538 = vpop.f32.mrf.mxu0
      %v539 = vadd.f32 %v440, %v538
      %v540 = vpop.f32.mrf.mxu0
      %541 = vmatprep.mubr.f32.mxu0 0.0
      %542 = vmatmul.mubr.f32.gmra.mxu0 %v410
      %v543 = vpop.f32.mrf.mxu0
      %v544 = vadd.f32 %v440, %v543
      %v545 = vpop.f32.mrf.mxu0
      %546 = vmatprep.mubr.f32.mxu0 0.0
      %547 = vmatmul.mubr.f32.gmra.mxu0 %v411
      %v548 = vpop.f32.mrf.mxu0
      %v549 = vadd.f32 %v440, %v548
      %v550 = vpop.f32.mrf.mxu0
      %551 = vmatprep.mubr.f32.mxu0 0.0
      %552 = vmatmul.mubr.f32.gmra.mxu0 %v412
      %v553 = vpop.f32.mrf.mxu0
      %v554 = vadd.f32 %v440, %v553
      %v555 = vpop.f32.mrf.mxu0
      %556 = vmatprep.mubr.f32.mxu0 0.0
      %557 = vmatmul.mubr.f32.gmra.mxu0 %v413
      %v558 = vpop.f32.mrf.mxu0
      %v559 = vadd.f32 %v440, %v558
      %v560 = vpop.f32.mrf.mxu0
      %561 = vmatprep.mubr.f32.mxu0 0.0
      %562 = vmatmul.mubr.f32.gmra.mxu0 %v414
      %v563 = vpop.f32.mrf.mxu0
      %v564 = vadd.f32 %v440, %v563
      %v565 = vpop.f32.mrf.mxu0
      %566 = vmatprep.mubr.f32.mxu0 0.0
      %567 = vmatmul.mubr.f32.gmra.mxu0 %v415
      %v568 = vpop.f32.mrf.mxu0
      %v569 = vadd.f32 %v440, %v568
      %v570 = vpop.f32.mrf.mxu0
      %571 = vmatprep.mubr.f32.mxu0 0.0
      %572 = vmatmul.mubr.f32.gmra.mxu0 %v416
      %v573 = vpop.f32.mrf.mxu0
      %v574 = vadd.f32 %v440, %v573
      %v575 = vpop.f32.mrf.mxu0
      %576 = vmatprep.mubr.f32.mxu0 0.0
      %577 = vmatmul.mubr.f32.gmra.mxu0 %v417
      %v578 = vpop.f32.mrf.mxu0
      %v579 = vadd.f32 %v440, %v578
      %v580 = vpop.f32.mrf.mxu0
      %581 = vmatprep.mubr.f32.mxu0 0.0
      %582 = vmatmul.mubr.f32.gmra.mxu0 %v418
      %v583 = vpop.f32.mrf.mxu0
      %v584 = vadd.f32 %v440, %v583
      %v585 = vpop.f32.mrf.mxu0
      %586 = vdwg.mxu0
      %v587 = vld [vmem:[%s6] sm:$0x1]
      %v589 = vlaneseq
      %v590 = vshrl.u32 %v589, 7
      %v591 = vsub.s32 0, %v590
      %v592 = vrot.slane %v587, %v591
      %v594 = vmul.f32 %v509, %v592
      %v595 = vmul.f32 %v514, %v592
      %v596 = vmul.f32 %v519, %v592
      %v597 = vmul.f32 %v524, %v592
      %v598 = vmul.f32 %v529, %v592
      %v599 = vmul.f32 %v534, %v592
      %v600 = vmul.f32 %v539, %v592
      %v601 = vmul.f32 %v544, %v592
      %v602 = vmul.f32 %v549, %v592
      %v603 = vmul.f32 %v554, %v592
      %v604 = vmul.f32 %v559, %v592
      %v605 = vmul.f32 %v564, %v592
      %v606 = vmul.f32 %v569, %v592
      %v607 = vmul.f32 %v574, %v592
      %v608 = vmul.f32 %v579, %v592
      %v609 = vmul.f32 %v584, %v592
      %v610 = vld [vmem:[%s7] sm:$0x1]
      %v612 = vlaneseq
      %v613 = vshrl.u32 %v612, 7
      %v614 = vsub.s32 0, %v613
      %v615 = vrot.slane %v610, %v614
      %v617 = vadd.f32 %v594, %v615
      %v618 = vadd.f32 %v595, %v615
      %v619 = vadd.f32 %v596, %v615
      %v620 = vadd.f32 %v597, %v615
      %v621 = vadd.f32 %v598, %v615
      %v622 = vadd.f32 %v599, %v615
      %v623 = vadd.f32 %v600, %v615
      %v624 = vadd.f32 %v601, %v615
      %v625 = vadd.f32 %v602, %v615
      %v626 = vadd.f32 %v603, %v615
      %v627 = vadd.f32 %v604, %v615
      %v628 = vadd.f32 %v605, %v615
      %v629 = vadd.f32 %v606, %v615
      %v630 = vadd.f32 %v607, %v615
      %v631 = vadd.f32 %v608, %v615
      %v632 = vadd.f32 %v609, %v615
      %v633 = vmax.f32 %v617, 0.0
      %v634 = vmax.f32 %v618, 0.0
      %v635 = vmax.f32 %v619, 0.0
      %v636 = vmax.f32 %v620, 0.0
      %v637 = vmax.f32 %v621, 0.0
      %v638 = vmax.f32 %v622, 0.0
      %v639 = vmax.f32 %v623, 0.0
      %v640 = vmax.f32 %v624, 0.0
      %v641 = vmax.f32 %v625, 0.0
      %v642 = vmax.f32 %v626, 0.0
      %v643 = vmax.f32 %v627, 0.0
      %v644 = vmax.f32 %v628, 0.0
      %v645 = vmax.f32 %v629, 0.0
      %v646 = vmax.f32 %v630, 0.0
      %v647 = vmax.f32 %v631, 0.0
      %v648 = vmax.f32 %v632, 0.0
      %v649 = vld [vmem:[#allocation12] sm:$0xff]
      %v650 = vld [vmem:[#allocation12 + $0x8] sm:$0xff]
      %v651 = vld [vmem:[#allocation12 + $0x10] sm:$0xff]
      %v652 = vld [vmem:[#allocation12 + $0x18] sm:$0xff]
      %v653 = vld [vmem:[#allocation12 + $0x20] sm:$0xff]
      %v654 = vld [vmem:[#allocation12 + $0x28] sm:$0xff]
      %v655 = vld [vmem:[#allocation12 + $0x30] sm:$0xff]
      %v656 = vld [vmem:[#allocation12 + $0x38] sm:$0xff]
      %v657 = vld [vmem:[#allocation12 + $0x40] sm:$0xff]
      %v658 = vld [vmem:[#allocation12 + $0x48] sm:$0xff]
      %v659 = vld [vmem:[#allocation12 + $0x50] sm:$0xff]
      %v660 = vld [vmem:[#allocation12 + $0x58] sm:$0xff]
      %v661 = vld [vmem:[#allocation12 + $0x60] sm:$0xff]
      %v662 = vld [vmem:[#allocation12 + $0x68] sm:$0xff]
      %v663 = vld [vmem:[#allocation12 + $0x70] sm:$0xff]
      %v664 = vld [vmem:[#allocation12 + $0x78] sm:$0xff]
      %v665 = vld [vmem:[%s9] sm:$0x1]
      %v667 = vlaneseq
      %v668 = vshrl.u32 %v667, 7
      %v669 = vsub.s32 0, %v668
      %v670 = vrot.slane %v665, %v669
      %672 = vmatprep.subr.mxu0 0.0
      %673 = vmatpush1.msra.mxu0 %v664
      %674 = vmatprep.subr.mxu0 0.0
      %675 = vmatpush1.msra.mxu0 %v663
      %676 = vmatprep.subr.mxu0 0.0
      %677 = vmatpush1.msra.mxu0 %v662
      %678 = vmatprep.subr.mxu0 0.0
      %679 = vmatpush1.msra.mxu0 %v661
      %680 = vmatprep.subr.mxu0 0.0
      %681 = vmatpush1.msra.mxu0 %v660
      %682 = vmatprep.subr.mxu0 0.0
      %683 = vmatpush1.msra.mxu0 %v659
      %684 = vmatprep.subr.mxu0 0.0
      %685 = vmatpush1.msra.mxu0 %v658
      %686 = vmatprep.subr.mxu0 0.0
      %687 = vmatpush1.msra.mxu0 %v657
      %688 = vmatprep.subr.mxu0 0.0
      %689 = vmatpush1.msra.mxu0 %v656
      %690 = vmatprep.subr.mxu0 0.0
      %691 = vmatpush1.msra.mxu0 %v655
      %692 = vmatprep.subr.mxu0 0.0
      %693 = vmatpush1.msra.mxu0 %v654
      %694 = vmatprep.subr.mxu0 0.0
      %695 = vmatpush1.msra.mxu0 %v653
      %696 = vmatprep.subr.mxu0 0.0
      %697 = vmatpush1.msra.mxu0 %v652
      %698 = vmatprep.subr.mxu0 0.0
      %699 = vmatpush1.msra.mxu0 %v651
      %700 = vmatprep.subr.mxu0 0.0
      %701 = vmatpush1.msra.mxu0 %v650
      %702 = vmatprep.subr.mxu0 0.0
      %703 = vmatpush1.msra.mxu0 %v649
      %704 = vmatprep.subr.mxu0 0.0
      %705 = vmatpush2.msra.mxu0 0.0
      %706 = vmatprep.subr.mxu0 0.0
      %707 = vmatpush2.msra.mxu0 0.0
      %708 = vmatprep.subr.mxu0 0.0
      %709 = vmatpush2.msra.mxu0 0.0
      %710 = vmatprep.subr.mxu0 0.0
      %711 = vmatpush2.msra.mxu0 0.0
      %712 = vmatprep.subr.mxu0 0.0
      %713 = vmatpush2.msra.mxu0 0.0
      %714 = vmatprep.subr.mxu0 0.0
      %715 = vmatpush2.msra.mxu0 0.0
      %716 = vmatprep.subr.mxu0 0.0
      %717 = vmatpush2.msra.mxu0 0.0
      %718 = vmatprep.subr.mxu0 0.0
      %719 = vmatpush2.msra.mxu0 0.0
      %720 = vmatprep.subr.mxu0 0.0
      %721 = vmatpush2.msra.mxu0 0.0
      %722 = vmatprep.subr.mxu0 0.0
      %723 = vmatpush2.msra.mxu0 0.0
      %724 = vmatprep.subr.mxu0 0.0
      %725 = vmatpush2.msra.mxu0 0.0
      %726 = vmatprep.subr.mxu0 0.0
      %727 = vmatpush2.msra.mxu0 0.0
      %728 = vmatprep.subr.mxu0 0.0
      %729 = vmatpush2.msra.mxu0 0.0
      %730 = vmatprep.subr.mxu0 0.0
      %731 = vmatpush2.msra.mxu0 0.0
      %732 = vmatprep.subr.mxu0 0.0
      %733 = vmatpush2.msra.mxu0 0.0
      %734 = vmatprep.subr.mxu0 0.0
      %735 = vmatpush2.msra.mxu0 0.0
      %736 = vmatprep.mubr.f32.mxu0 0.0
      %737 = vmatmul.mubr.f32.gmra.mxu0 %v633
      %v738 = vpop.f32.mrf.mxu0
      %v739 = vadd.f32 %v670, %v738
      %v740 = vpop.f32.mrf.mxu0
      %741 = vmatprep.mubr.f32.mxu0 0.0
      %742 = vmatmul.mubr.f32.gmra.mxu0 %v634
      %v743 = vpop.f32.mrf.mxu0
      %v744 = vadd.f32 %v670, %v743
      %v745 = vpop.f32.mrf.mxu0
      %746 = vmatprep.mubr.f32.mxu0 0.0
      %747 = vmatmul.mubr.f32.gmra.mxu0 %v635
      %v748 = vpop.f32.mrf.mxu0
      %v749 = vadd.f32 %v670, %v748
      %v750 = vpop.f32.mrf.mxu0
      %751 = vmatprep.mubr.f32.mxu0 0.0
      %752 = vmatmul.mubr.f32.gmra.mxu0 %v636
      %v753 = vpop.f32.mrf.mxu0
      %v754 = vadd.f32 %v670, %v753
      %v755 = vpop.f32.mrf.mxu0
      %756 = vmatprep.mubr.f32.mxu0 0.0
      %757 = vmatmul.mubr.f32.gmra.mxu0 %v637
      %v758 = vpop.f32.mrf.mxu0
      %v759 = vadd.f32 %v670, %v758
      %v760 = vpop.f32.mrf.mxu0
      %761 = vmatprep.mubr.f32.mxu0 0.0
      %762 = vmatmul.mubr.f32.gmra.mxu0 %v638
      %v763 = vpop.f32.mrf.mxu0
      %v764 = vadd.f32 %v670, %v763
      %v765 = vpop.f32.mrf.mxu0
      %766 = vmatprep.mubr.f32.mxu0 0.0
      %767 = vmatmul.mubr.f32.gmra.mxu0 %v639
      %v768 = vpop.f32.mrf.mxu0
      %v769 = vadd.f32 %v670, %v768
      %v770 = vpop.f32.mrf.mxu0
      %771 = vmatprep.mubr.f32.mxu0 0.0
      %772 = vmatmul.mubr.f32.gmra.mxu0 %v640
      %v773 = vpop.f32.mrf.mxu0
      %v774 = vadd.f32 %v670, %v773
      %v775 = vpop.f32.mrf.mxu0
      %776 = vmatprep.mubr.f32.mxu0 0.0
      %777 = vmatmul.mubr.f32.gmra.mxu0 %v641
      %v778 = vpop.f32.mrf.mxu0
      %v779 = vadd.f32 %v670, %v778
      %v780 = vpop.f32.mrf.mxu0
      %781 = vmatprep.mubr.f32.mxu0 0.0
      %782 = vmatmul.mubr.f32.gmra.mxu0 %v642
      %v783 = vpop.f32.mrf.mxu0
      %v784 = vadd.f32 %v670, %v783
      %v785 = vpop.f32.mrf.mxu0
      %786 = vmatprep.mubr.f32.mxu0 0.0
      %787 = vmatmul.mubr.f32.gmra.mxu0 %v643
      %v788 = vpop.f32.mrf.mxu0
      %v789 = vadd.f32 %v670, %v788
      %v790 = vpop.f32.mrf.mxu0
      %791 = vmatprep.mubr.f32.mxu0 0.0
      %792 = vmatmul.mubr.f32.gmra.mxu0 %v644
      %v793 = vpop.f32.mrf.mxu0
      %v794 = vadd.f32 %v670, %v793
      %v795 = vpop.f32.mrf.mxu0
      %796 = vmatprep.mubr.f32.mxu0 0.0
      %797 = vmatmul.mubr.f32.gmra.mxu0 %v645
      %v798 = vpop.f32.mrf.mxu0
      %v799 = vadd.f32 %v670, %v798
      %v800 = vpop.f32.mrf.mxu0
      %801 = vmatprep.mubr.f32.mxu0 0.0
      %802 = vmatmul.mubr.f32.gmra.mxu0 %v646
      %v803 = vpop.f32.mrf.mxu0
      %v804 = vadd.f32 %v670, %v803
      %v805 = vpop.f32.mrf.mxu0
      %806 = vmatprep.mubr.f32.mxu0 0.0
      %807 = vmatmul.mubr.f32.gmra.mxu0 %v647
      %v808 = vpop.f32.mrf.mxu0
      %v809 = vadd.f32 %v670, %v808
      %v810 = vpop.f32.mrf.mxu0
      %811 = vmatprep.mubr.f32.mxu0 0.0
      %812 = vmatmul.mubr.f32.gmra.mxu0 %v648
      %v813 = vpop.f32.mrf.mxu0
      %v814 = vadd.f32 %v670, %v813
      %v815 = vpop.f32.mrf.mxu0
      %816 = vdwg.mxu0
      %v817 = vmax.f32 %v739, 0.0
      %v818 = vmax.f32 %v744, 0.0
      %v819 = vmax.f32 %v749, 0.0
      %v820 = vmax.f32 %v754, 0.0
      %v821 = vmax.f32 %v759, 0.0
      %v822 = vmax.f32 %v764, 0.0
      %v823 = vmax.f32 %v769, 0.0
      %v824 = vmax.f32 %v774, 0.0
      %v825 = vmax.f32 %v779, 0.0
      %v826 = vmax.f32 %v784, 0.0
      %v827 = vmax.f32 %v789, 0.0
      %v828 = vmax.f32 %v794, 0.0
      %v829 = vmax.f32 %v799, 0.0
      %v830 = vmax.f32 %v804, 0.0
      %v831 = vmax.f32 %v809, 0.0
      %v832 = vmax.f32 %v814, 0.0
      %v833 = vpack.c.bf16 %v818, %v817
      %v834 = vpack.c.bf16 %v820, %v819
      %v835 = vpack.c.bf16 %v822, %v821
      %v836 = vpack.c.bf16 %v824, %v823
      %v837 = vpack.c.bf16 %v826, %v825
      %v838 = vpack.c.bf16 %v828, %v827
      %v839 = vpack.c.bf16 %v830, %v829
      %v840 = vpack.c.bf16 %v832, %v831
      %v849 = vunpack.c.l.b16 %v833
      %v850 = vunpack.c.h.b16 %v833
      %v851 = vunpack.c.l.b16 %v834
      %v852 = vunpack.c.h.b16 %v834
      %v853 = vunpack.c.l.b16 %v835
      %v854 = vunpack.c.h.b16 %v835
      %v855 = vunpack.c.l.b16 %v836
      %v856 = vunpack.c.h.b16 %v836
      %v857 = vunpack.c.l.b16 %v837
      %v858 = vunpack.c.h.b16 %v837
      %v859 = vunpack.c.l.b16 %v838
      %v860 = vunpack.c.h.b16 %v838
      %v861 = vunpack.c.l.b16 %v839
      %v862 = vunpack.c.h.b16 %v839
      %v863 = vunpack.c.l.b16 %v840
      %v864 = vunpack.c.h.b16 %v840
      %v865 = vpack.c.b16 %v849, %v849
      %v866 = vpack.c.b16 %v850, %v850
      %v867 = vpack.c.b16 %v851, %v851
      %v868 = vpack.c.b16 %v852, %v852
      %v869 = vpack.c.b16 %v853, %v853
      %v870 = vpack.c.b16 %v854, %v854
      %v871 = vpack.c.b16 %v855, %v855
      %v872 = vpack.c.b16 %v856, %v856
      %v873 = vpack.c.b16 %v857, %v857
      %v874 = vpack.c.b16 %v858, %v858
      %v875 = vpack.c.b16 %v859, %v859
      %v876 = vpack.c.b16 %v860, %v860
      %v877 = vpack.c.b16 %v861, %v861
      %v878 = vpack.c.b16 %v862, %v862
      %v879 = vpack.c.b16 %v863, %v863
      %v880 = vpack.c.b16 %v864, %v864
      %897 = vst [vmem:[#allocation14] sm:$0xf] %v865
      %898 = vst [vmem:[#allocation14 + $0x4] sm:$0xf] %v866
      %899 = vst [vmem:[#allocation14 + $0x8] sm:$0xf] %v867
      %900 = vst [vmem:[#allocation14 + $0xc] sm:$0xf] %v868
      %901 = vst [vmem:[#allocation14 + $0x10] sm:$0xf] %v869
      %902 = vst [vmem:[#allocation14 + $0x14] sm:$0xf] %v870
      %903 = vst [vmem:[#allocation14 + $0x18] sm:$0xf] %v871
      %904 = vst [vmem:[#allocation14 + $0x1c] sm:$0xf] %v872
      %905 = vst [vmem:[#allocation14 + $0x20] sm:$0xf] %v873
      %906 = vst [vmem:[#allocation14 + $0x24] sm:$0xf] %v874
      %907 = vst [vmem:[#allocation14 + $0x28] sm:$0xf] %v875
      %908 = vst [vmem:[#allocation14 + $0x2c] sm:$0xf] %v876
      %909 = vst [vmem:[#allocation14 + $0x30] sm:$0xf] %v877
      %910 = vst [vmem:[#allocation14 + $0x34] sm:$0xf] %v878
      %911 = vst [vmem:[#allocation14 + $0x38] sm:$0xf] %v879
      %912 = vst [vmem:[#allocation14 + $0x3c] sm:$0xf] %v880
    $region61: #{tpu_custom_call.1} parent=1 // pred_fallthru
      _
    // Predicated region
    $region62: #{tpu_custom_call.1} parent=1 // pred_check
      _
    $region63: #{tpu_custom_call.1} parent=1 // pred_check_branch
      %914 = sbr.rel (0) target = $region65
    $region64: #{tpu_custom_call.1} parent=1 // pred_region
      %s916 = ssub.s32 1024, 1024
      %917 = vsyncadd [#allocation8], %s916
      %s918 = sshll.u32 [#allocation14], 4
      %s919 = int_to_ptr.vmem [resolvable:$true] %s918
      %924 = dma.vmem_to_hbm [thread:$0]  %s919, 1024, %s10, [#allocation8], 64, 64, 4
    $region65: #{tpu_custom_call.1} parent=1 // pred_fallthru
      _
    // Predicated region
    $region66: #{tpu_custom_call.1} parent=1 // pred_check
      _
    $region67: #{tpu_custom_call.1} parent=1 // pred_check_branch
      %926 = sbr.rel (0) target = $region69
    $region68: #{tpu_custom_call.1} parent=1 // pred_region
      %927 = dma.done [#allocation8], 1024
    $region69: #{tpu_custom_call.1} parent=1 // pred_fallthru
      _
    %928 = vsyncpa [#allocation7], 1
    %929 = vsyncpa [#allocation10], 1
    %930 = vsyncpa [#allocation13], 1
    %931 = vsyncpa [#allocation8], 1

</llo_original>
